<compile_context>
chip_gen: v7x
topology: tpu7x:2x2x1
jax: 0.10.0
libtpu: 0.0.40
codegen_flags: <defaults>
</compile_context>

<pallas_src>
import jax
import jax.numpy as jnp
from jax.experimental import pallas as pl
from jax.experimental.pallas import tpu as pltpu


_VMEM_INPUT_BUDGET = 24 * 1024 * 1024   # bytes for the double-buffered input blocks
_VMEM_LIMIT_BYTES = 48 * 1024 * 1024    # scoped limit: headroom on v7x (64 MiB physical)
_MAX_ROW_TILE = 1024


def _rdrop_partial_kernel(l1_ref, l2_ref, out_ref):
    """One row-tile: writes an (8, N) partial sum of the symmetric KL (un-halved)."""
    l1 = l1_ref[...].astype(jnp.float32)
    l2 = l2_ref[...].astype(jnp.float32)

    # Numerically stable softmax / log-softmax along lanes, reusing exp(z)
    # so each input costs a single vector exp (EUP) per element.
    z1 = l1 - jnp.max(l1, axis=-1, keepdims=True)
    e1 = jnp.exp(z1)
    s1 = jnp.sum(e1, axis=-1, keepdims=True)
    logp1 = z1 - jnp.log(s1)
    p1 = e1 / s1

    z2 = l2 - jnp.max(l2, axis=-1, keepdims=True)
    e2 = jnp.exp(z2)
    s2 = jnp.sum(e2, axis=-1, keepdims=True)
    logp2 = z2 - jnp.log(s2)
    p2 = e2 / s2

    # p2*(logp2-logp1) + p1*(logp1-logp2) == (p1 - p2) * (logp1 - logp2)
    # (the 0.5 and alpha/mean scaling are folded into the wrapper's finalize).
    sym = (p1 - p2) * (logp1 - logp2)

    # Fold the tile's rows in aligned groups of 8 sublanes: pure VPU adds,
    # no in-kernel cross-lane/cross-sublane reduction and no scalar RMW chain.
    rows = sym.shape[0]
    acc = sym[0:8, :]
    for r in range(1, rows // 8):
        acc = acc + sym[r * 8:(r + 1) * 8, :]
    out_ref[0] = acc


def _choose_row_tile(B, N, itemsize):
    """Largest sublane-aligned row tile whose double-buffered inputs fit the budget."""
    sub = 16 if itemsize < 4 else 8          # bf16 packs 16 rows per vreg, f32 packs 8
    per_row = 4 * N * itemsize               # 2 inputs x 2 pipeline buffers
    rows = min(_MAX_ROW_TILE, _VMEM_INPUT_BUDGET // max(per_row, 1))
    rows = max(sub, (rows // sub) * sub)
    b_round = ((B + sub - 1) // sub) * sub   # don't make the tile bigger than the batch
    return max(sub, min(rows, b_round))


def rdrop_loss(logits1, logits2, alpha=4.0, row_tile=None):
    """alpha * mean( 0.5 * symmetric-KL ) over all elements of (B, N) logit pairs."""
    assert logits1.shape == logits2.shape and logits1.ndim == 2
    B, N = logits1.shape
    itemsize = jnp.dtype(logits1.dtype).itemsize
    if row_tile is None:
        row_tile = _choose_row_tile(B, N, itemsize)
    assert row_tile % 8 == 0

    # Zero-pad ragged batches: identical padded rows -> p1 == p2 -> zero KL,
    # so they contribute nothing; the mean below divides by the true B*N.
    B_pad = ((B + row_tile - 1) // row_tile) * row_tile
    if B_pad != B:
        pad = ((0, B_pad - B), (0, 0))
        logits1 = jnp.pad(logits1, pad)
        logits2 = jnp.pad(logits2, pad)
    num_tiles = B_pad // row_tile

    partial = pl.pallas_call(
        _rdrop_partial_kernel,
        out_shape=jax.ShapeDtypeStruct((num_tiles, 8, N), jnp.float32),
        grid_spec=pl.GridSpec(
            grid=(num_tiles,),
            in_specs=[
                pl.BlockSpec((row_tile, N), lambda i: (i, 0)),
                pl.BlockSpec((row_tile, N), lambda i: (i, 0)),
            ],
            out_specs=pl.BlockSpec((1, 8, N), lambda i: (i, 0, 0)),
        ),
        compiler_params=pltpu.CompilerParams(
            # Tiles are fully independent -> megacore can shard the grid axis.
            dimension_semantics=("parallel",),
            vmem_limit_bytes=_VMEM_LIMIT_BYTES,
        ),
    )(logits1, logits2)

    # Single tiny reduction + (0.5 * alpha / mean) finalize outside the kernel.
    return (0.5 * float(alpha) / float(B * N)) * jnp.sum(partial)


def rdrop_loss_ref(logits1, logits2, alpha=4.0):
    """Pure-JAX reference mirroring the PyTorch forward."""
    logp1 = jax.nn.log_softmax(logits1, axis=-1)
    logp2 = jax.nn.log_softmax(logits2, axis=-1)
    p1 = jnp.exp(logp1)
    p2 = jnp.exp(logp2)
    kl1 = p2 * (logp2 - logp1)
    kl2 = p1 * (logp1 - logp2)
    return alpha * jnp.mean(0.5 * (kl1 + kl2))


if __name__ == "__main__":
    key = jax.random.PRNGKey(0)
    k1, k2 = jax.random.split(key)
    B, N = 8, 32  # small batch of logit vectors
    logits1 = jax.random.normal(k1, (B, N), dtype=jnp.float32)
    logits2 = jax.random.normal(k2, (B, N), dtype=jnp.float32)

    loss = rdrop_loss(logits1, logits2, alpha=4.0)
    loss = jax.block_until_ready(loss)

    ref = rdrop_loss_ref(logits1, logits2, alpha=4.0)
    assert jnp.allclose(loss, ref, rtol=1e-5, atol=1e-6), (loss, ref)

    print("KERNEL_OK")
</pallas_src>

<mosaic_0001>
module attributes {stable_mosaic.version = 11 : i64} {
  func.func @_rdrop_partial_kernel(%arg0: i32, %arg1: memref<8x32xf32, #tpu.memory_space<vmem>>, %arg2: memref<8x32xf32, #tpu.memory_space<vmem>>, %arg3: memref<1x8x32xf32, #tpu.memory_space<vmem>>) attributes {dimension_semantics = [#tpu.dimension_semantics<parallel>], iteration_bounds = array<i64: 1>, scalar_prefetch = 0 : i64, scratch_operands = 0 : i64, tpu.core_type = #tpu.core_type<tc>, window_params = [{transform_indices = @transform_0, window_bounds = array<i64: 8, 32>}, {transform_indices = @transform_1, window_bounds = array<i64: 8, 32>}, {transform_indices = @transform_2, window_bounds = array<i64: 1, 8, 32>}]} {
    %c0 = arith.constant 0 : index
    %c0_0 = arith.constant 0 : index
    %0 = vector.load %arg1[%c0, %c0_0] : memref<8x32xf32, #tpu.memory_space<vmem>>, vector<8x32xf32>
    %c0_1 = arith.constant 0 : index
    %c0_2 = arith.constant 0 : index
    %1 = vector.load %arg2[%c0_1, %c0_2] : memref<8x32xf32, #tpu.memory_space<vmem>>, vector<8x32xf32>
    %cst = arith.constant dense<0xFF800000> : vector<8xf32>
    %2 = vector.multi_reduction <maximumf>, %0, %cst [1] : vector<8x32xf32> to vector<8xf32>
    %3 = vector.shape_cast %2 : vector<8xf32> to vector<8x1xf32>
    %4 = vector.broadcast %3 : vector<8x1xf32> to vector<8x32xf32>
    %5 = arith.subf %0, %4 : vector<8x32xf32>
    %6 = math.exp %5 : vector<8x32xf32>
    %cst_3 = arith.constant dense<0.000000e+00> : vector<8xf32>
    %7 = vector.multi_reduction <add>, %6, %cst_3 [1] : vector<8x32xf32> to vector<8xf32>
    %8 = vector.shape_cast %7 : vector<8xf32> to vector<8x1xf32>
    %9 = math.log %8 : vector<8x1xf32>
    %10 = vector.broadcast %9 : vector<8x1xf32> to vector<8x32xf32>
    %11 = arith.subf %5, %10 : vector<8x32xf32>
    %12 = vector.broadcast %8 : vector<8x1xf32> to vector<8x32xf32>
    %13 = arith.divf %6, %12 : vector<8x32xf32>
    %cst_4 = arith.constant dense<0xFF800000> : vector<8xf32>
    %14 = vector.multi_reduction <maximumf>, %1, %cst_4 [1] : vector<8x32xf32> to vector<8xf32>
    %15 = vector.shape_cast %14 : vector<8xf32> to vector<8x1xf32>
    %16 = vector.broadcast %15 : vector<8x1xf32> to vector<8x32xf32>
    %17 = arith.subf %1, %16 : vector<8x32xf32>
    %18 = math.exp %17 : vector<8x32xf32>
    %cst_5 = arith.constant dense<0.000000e+00> : vector<8xf32>
    %19 = vector.multi_reduction <add>, %18, %cst_5 [1] : vector<8x32xf32> to vector<8xf32>
    %20 = vector.shape_cast %19 : vector<8xf32> to vector<8x1xf32>
    %21 = math.log %20 : vector<8x1xf32>
    %22 = vector.broadcast %21 : vector<8x1xf32> to vector<8x32xf32>
    %23 = arith.subf %17, %22 : vector<8x32xf32>
    %24 = vector.broadcast %20 : vector<8x1xf32> to vector<8x32xf32>
    %25 = arith.divf %18, %24 : vector<8x32xf32>
    %26 = arith.subf %13, %25 : vector<8x32xf32>
    %27 = arith.subf %11, %23 : vector<8x32xf32>
    %28 = arith.mulf %26, %27 : vector<8x32xf32>
    %c0_6 = arith.constant 0 : index
    %c0_7 = arith.constant 0 : index
    %c0_8 = arith.constant 0 : index
    %29 = vector.load %arg3[%c0_6, %c0_7, %c0_8] : memref<1x8x32xf32, #tpu.memory_space<vmem>>, vector<1x8x32xf32>
    %30 = vector.shape_cast %29 : vector<1x8x32xf32> to vector<8x32xf32>
    %31 = vector.shape_cast %28 : vector<8x32xf32> to vector<1x8x32xf32>
    tpu.vector_store %arg3[%c0_6, %c0_7, %c0_8], %31 {strides = array<i32>} : memref<1x8x32xf32, #tpu.memory_space<vmem>>, vector<1x8x32xf32>,
    return
  }
  func.func @transform_0(%arg0: i32) -> (i32, i32) {
    %c0_i32 = arith.constant 0 : i32
    %c0_i32_0 = arith.constant 0 : i32
    return %arg0, %c0_i32 : i32, i32
  }
  func.func @transform_1(%arg0: i32) -> (i32, i32) {
    %c0_i32 = arith.constant 0 : i32
    %c0_i32_0 = arith.constant 0 : i32
    return %arg0, %c0_i32 : i32, i32
  }
  func.func @transform_2(%arg0: i32) -> (i32, i32, i32) {
    %c0_i32 = arith.constant 0 : i32
    %c0_i32_0 = arith.constant 0 : i32
    %c0_i32_1 = arith.constant 0 : i32
    return %arg0, %c0_i32, %c0_i32_0 : i32, i32, i32
  }
}

</mosaic_0001>

<llo_original>
// kernel: tpu_custom_call.1
$region0: #{tpu_custom_call.1}
  #allocation0 [shape = 'u32[]', space=smem, size = 0x4, offset = 0x4, fixed_abs, tag = 'smem constant byte address 0x4 - core index']
  #allocation1 [shape = 'u32[144,128]{1,0:T(1,128)}', space=vmem, size = 0x12000, scoped, tag = 'internal scratch']
  %s0 = inlined_call_operand.hbm [shape: f32[8,32], index: 0, kind: input, shape index: {}]
  %s1 = inlined_call_operand.hbm [shape: f32[8,32], index: 1, kind: input, shape index: {}]
  %s2 = inlined_call_operand.hbm [shape: f32[1,8,32], index: 2, kind: output, shape index: {}]
  %s3 = sld [smem:[#allocation0]]
  $region26: #{tpu_custom_call.1} parent=0
    _
  %s5 = ssub.s32 1, %s3
  %s6 = scalar_select 0, %s5, %s3
  $region1: #{tpu_custom_call.1} parent=0
    #allocation2 [shape = 'u8[4096]{0}', space=vmem, size = 0x1000, scoped, tag = 'input window, operand 0, single buffered']
    #allocation3 [shape = 's32[1]{0}', space=sflag, size = 0x4, scoped, tag = 'scoped memory for tpu_custom_call.1']
    #allocation4 [shape = 's32[1]{0}', space=sflag, size = 0x4, scoped, tag = 'scoped memory for tpu_custom_call.1']
    #allocation5 [shape = 'u8[4096]{0}', space=vmem, size = 0x1000, scoped, tag = 'input window, operand 1, single buffered']
    #allocation6 [shape = 's32[1]{0}', space=sflag, size = 0x4, scoped, tag = 'scoped memory for tpu_custom_call.1']
    #allocation7 [shape = 'u8[4096]{0}', space=vmem, size = 0x1000, scoped, tag = 'output window, operand 0, single buffered']
    %7 = vsyncpa [#allocation3], 0
    %8 = vsyncpa [#allocation6], 0
    %9 = vsyncpa [#allocation4], 0
    // Predicated region
    $region2: #{tpu_custom_call.1} parent=1 // pred_check
      _
    $region3: #{tpu_custom_call.1} parent=1 // pred_check_branch
      %11 = sbr.rel (0) target = $region5
    $region4: #{tpu_custom_call.1} parent=1 // pred_region
      %s13 = ssub.s32 128, 128
      %14 = vsyncadd [#allocation3], %s13
      %s16 = sshll.u32 [#allocation2], 4
      %s17 = int_to_ptr.vmem [resolvable:$true] %s16
      %19 = dma.hbm_to_vmem [thread:$0]  %s0, 128, %s17, [#allocation3]
    $region5: #{tpu_custom_call.1} parent=1 // pred_fallthru
      _
    // Predicated region
    $region6: #{tpu_custom_call.1} parent=1 // pred_check
      _
    $region7: #{tpu_custom_call.1} parent=1 // pred_check_branch
      %21 = sbr.rel (0) target = $region9
    $region8: #{tpu_custom_call.1} parent=1 // pred_region
      %s23 = ssub.s32 128, 128
      %24 = vsyncadd [#allocation6], %s23
      %s26 = sshll.u32 [#allocation5], 4
      %s27 = int_to_ptr.vmem [resolvable:$true] %s26
      %29 = dma.hbm_to_vmem [thread:$0]  %s1, 128, %s27, [#allocation6]
    $region9: #{tpu_custom_call.1} parent=1 // pred_fallthru
      _
    // Predicated region
    $region10: #{tpu_custom_call.1} parent=1 // pred_check
      _
    $region11: #{tpu_custom_call.1} parent=1 // pred_check_branch
      %31 = sbr.rel (0) target = $region13
    $region12: #{tpu_custom_call.1} parent=1 // pred_region
      %32 = dma.done [#allocation3], 128
    $region13: #{tpu_custom_call.1} parent=1 // pred_fallthru
      _
    // Predicated region
    $region14: #{tpu_custom_call.1} parent=1 // pred_check
      _
    $region15: #{tpu_custom_call.1} parent=1 // pred_check_branch
      %34 = sbr.rel (0) target = $region17
    $region16: #{tpu_custom_call.1} parent=1 // pred_region
      %35 = dma.done [#allocation6], 128
    $region17: #{tpu_custom_call.1} parent=1 // pred_fallthru
      _
    %v36 = vld [vmem:[#allocation2] sm:$0xff]
    %v37 = vld [vmem:[#allocation5] sm:$0xff]
    %vm38 = vcmask 261120
    %v39 = vsel %vm38, %v36, -inf
    %40 = vmax.xlane.f32.xlu0 %v39
    %v41 = vpop.xlane.xlu0 %40
    %v42 = vsub.f32 %v36, %v41
    %v43 = vmul.f32 %v42, 1.442695
    %v44 = vpow.pop %v43
    %v45 = vsel %vm38, %v44, 0.0
    %46 = vadd.xlane.f32.xlu0 %v45
    %v47 = vpop.xlane.xlu0 %46
    %v48 = vlog2.pop %v47
    %v49 = vmul.f32 %v48, 0.6931472
    %v50 = vsub.f32 %v42, %v49
    %v51 = vrcp.pop %v47
    %v52 = vmul.f32 %v44, %v51
    %v53 = vsel %vm38, %v37, -inf
    %54 = vmax.xlane.f32.xlu0 %v53
    %v55 = vpop.xlane.xlu0 %54
    %v56 = vsub.f32 %v37, %v55
    %v57 = vmul.f32 %v56, 1.442695
    %v58 = vpow.pop %v57
    %v59 = vsel %vm38, %v58, 0.0
    %60 = vadd.xlane.f32.xlu0 %v59
    %v61 = vpop.xlane.xlu0 %60
    %v62 = vlog2.pop %v61
    %v63 = vmul.f32 %v62, 0.6931472
    %v64 = vsub.f32 %v56, %v63
    %v65 = vrcp.pop %v61
    %v66 = vmul.f32 %v58, %v65
    %v67 = vsub.f32 %v52, %v66
    %v68 = vsub.f32 %v50, %v64
    %v69 = vmul.f32 %v67, %v68
    %70 = vst.msk [vmem:[#allocation7] sm:$0xff] %vm38, %v69
    // Predicated region
    $region18: #{tpu_custom_call.1} parent=1 // pred_check
      _
    $region19: #{tpu_custom_call.1} parent=1 // pred_check_branch
      %72 = sbr.rel (0) target = $region21
    $region20: #{tpu_custom_call.1} parent=1 // pred_region
      %s74 = ssub.s32 128, 128
      %75 = vsyncadd [#allocation4], %s74
      %s77 = sshll.u32 [#allocation7], 4
      %s78 = int_to_ptr.vmem [resolvable:$true] %s77
      %80 = dma.vmem_to_hbm [thread:$0]  %s78, 128, %s2, [#allocation4]
    $region21: #{tpu_custom_call.1} parent=1 // pred_fallthru
      _
    // Predicated region
    $region22: #{tpu_custom_call.1} parent=1 // pred_check
      _
    $region23: #{tpu_custom_call.1} parent=1 // pred_check_branch
      %82 = sbr.rel (0) target = $region25
    $region24: #{tpu_custom_call.1} parent=1 // pred_region
      %83 = dma.done [#allocation4], 128
    $region25: #{tpu_custom_call.1} parent=1 // pred_fallthru
      _
    %84 = vsyncpa [#allocation3], 1
    %85 = vsyncpa [#allocation6], 1
    %86 = vsyncpa [#allocation4], 1

</llo_original>
